<compile_context>
chip_gen: v7x
topology: tpu7x:2x2x1
jax: 0.10.0
libtpu: 0.0.40
codegen_flags: <defaults>
</compile_context>

<pallas_src>
import jax
import jax.numpy as jnp
import numpy as np
from jax.experimental import pallas as pl
from jax.experimental.pallas import tpu as pltpu


def _upsample_kernel(x_ref, w_ref, b_ref, out_ref):
    # x_ref  : (1, C_in, L)      f32, NCW per-batch tile (no wrapper transform)
    # w_ref  : (4, C_in, C_out)  bf16, ConvTranspose1d taps k = 0..3
    # b_ref  : (1, C_out)        f32 bias
    # out_ref: (1, L, 2*C_out)   f32, lanes = [even | odd]
    C_in = x_ref.shape[1]
    L = out_ref.shape[1]
    C_out = out_ref.shape[2] // 2

    # NCW -> (L, C_in) on the XLU (hidden under MXU work), f32.
    x_t = jnp.transpose(x_ref[0], (1, 0))                     # x[j]      (L, C_in)

    # In-kernel zero halo: row shifts built with an explicit zero row (f32,
    # 32-bit sublane ops are the most robust lowering path), then cast to bf16.
    zrow = jnp.zeros((1, C_in), x_t.dtype)
    x_m = jnp.concatenate([zrow, x_t[:L - 1, :]], axis=0)     # x[j-1], 0 at j=0
    x_p = jnp.concatenate([x_t[1:, :], zrow], axis=0)         # x[j+1], 0 at j=L-1

    xc = x_t.astype(jnp.bfloat16)
    xm = x_m.astype(jnp.bfloat16)
    xn = x_p.astype(jnp.bfloat16)

    w0 = w_ref[0]
    w1 = w_ref[1]
    w2 = w_ref[2]
    w3 = w_ref[3]

    # Four accumulating bf16 dots, f32 accumulation. No zero-padded MACs.
    ev = (jnp.dot(xc, w1, preferred_element_type=jnp.float32)
          + jnp.dot(xm, w3, preferred_element_type=jnp.float32))   # (L, C_out)
    od = (jnp.dot(xc, w2, preferred_element_type=jnp.float32)
          + jnp.dot(xn, w0, preferred_element_type=jnp.float32))   # (L, C_out)

    b = b_ref[...]                                             # (1, C_out) f32
    ev = ev + b
    od = od + b
    ev = jnp.where(ev > 0, ev, 0.1 * ev)                       # LeakyReLU(0.1)
    od = jnp.where(od > 0, od, 0.1 * od)

    # Direct stores into the [even | odd] halves (lane-aligned when C_out % 128 == 0).
    out_ref[0, :, :C_out] = ev.astype(out_ref.dtype)
    out_ref[0, :, C_out:] = od.astype(out_ref.dtype)


@jax.jit
def upsample(x, feature_map, weight, bias):
    """x: (N, C_in, L) f32.  feature_map: (N, C_f, 2L).
    weight: (C_in, C_out, 4) [PyTorch ConvTranspose1d layout].  bias: (C_out,).
    Returns (N, C_out + C_f, 2L) — matches UpSample.forward."""
    N, C_in, L = x.shape
    C_out = weight.shape[1]

    # Tiny one-time weight/bias prep: (C_in, C_out, 4) -> (4, C_in, C_out) bf16.
    w = jnp.transpose(weight, (2, 0, 1)).astype(jnp.bfloat16)
    b = bias.reshape(1, C_out).astype(jnp.float32)

    y = pl.pallas_call(
        _upsample_kernel,
        out_shape=jax.ShapeDtypeStruct((N, L, 2 * C_out), x.dtype),
        grid_spec=pltpu.PrefetchScalarGridSpec(
            num_scalar_prefetch=0,
            grid=(N,),
            in_specs=[
                pl.BlockSpec((1, C_in, L), lambda n: (n, 0, 0)),        # x, NCW
                pl.BlockSpec((4, C_in, C_out), lambda n: (0, 0, 0)),    # taps
                pl.BlockSpec((1, C_out), lambda n: (0, 0)),             # bias
            ],
            out_specs=pl.BlockSpec((1, L, 2 * C_out), lambda n: (n, 0, 0))),
        compiler_params=pltpu.CompilerParams(
            dimension_semantics=("parallel",)),
    )(x, w, b)

    # [even | odd] lanes -> interleaved spatial positions is a FREE contiguous
    # reshape; the remaining transpose-to-NCW + channel concat fuse into a
    # single XLA copy pass.
    out_nlc = y.reshape(N, 2 * L, C_out)                       # (N, 2L, C_out)
    out = jnp.transpose(out_nlc, (0, 2, 1))                    # (N, C_out, 2L)
    return jnp.concatenate([out, feature_map], axis=1)         # torch.cat(dim=1)


def _reference(x, feature_map, weight, bias):
    """Direct numpy ConvTranspose1d(k=4, s=2, p=1) + LeakyReLU(0.1) + concat."""
    x = np.asarray(x); weight = np.asarray(weight); bias = np.asarray(bias)
    N, C_in, L = x.shape
    C_out = weight.shape[1]
    out = np.zeros((N, C_out, 2 * L), dtype=np.float32)
    for n in range(N):
        for i in range(L):
            for k in range(4):
                o = 2 * i - 1 + k
                if 0 <= o < 2 * L:
                    out[n, :, o] += x[n, :, i] @ weight[:, :, k]
    out += bias[None, :, None]
    out = np.where(out > 0, out, 0.1 * out)
    return np.concatenate([out, np.asarray(feature_map)], axis=1)


if __name__ == "__main__":
    # Small deterministic example: N=2, in_channels=8, out_channels=4, L=16.
    N, C_in, C_out, L = 2, 8, 4, 16
    key = jax.random.PRNGKey(0)
    kx, kf, kw, kb = jax.random.split(key, 4)

    x = jax.random.normal(kx, (N, C_in, L), dtype=jnp.float32)
    feature_map = jax.random.normal(kf, (N, C_out, 2 * L), dtype=jnp.float32)

    # ConvTranspose1d weight shape in PyTorch: (in_channels, out_channels, kernel)
    fan = C_in * 4
    bound = 1.0 / np.sqrt(fan)
    weight = jax.random.uniform(kw, (C_in, C_out, 4), jnp.float32, -bound, bound)
    bias = jax.random.uniform(kb, (C_out,), jnp.float32, -bound, bound)

    out = upsample(x, feature_map, weight, bias)
    out = jax.block_until_ready(out)

    ref = _reference(x, feature_map, weight, bias)
    assert out.shape == (N, C_out + C_out, 2 * L), out.shape
    # bf16 MXU operands with f32 accumulation -> relaxed tolerance.
    np.testing.assert_allclose(np.asarray(out), ref, rtol=2e-2, atol=2e-2)

    print("KERNEL_OK")
</pallas_src>

<mosaic_0001>
module attributes {stable_mosaic.version = 11 : i64} {
  func.func @_upsample_kernel(%arg0: i32, %arg1: memref<1x8x16xf32, #tpu.memory_space<vmem>>, %arg2: memref<4x8x4xbf16, #tpu.memory_space<vmem>>, %arg3: memref<1x4xf32, #tpu.memory_space<vmem>>, %arg4: memref<1x16x8xf32, #tpu.memory_space<vmem>>) attributes {dimension_semantics = [#tpu.dimension_semantics<parallel>], iteration_bounds = array<i64: 2>, scalar_prefetch = 0 : i64, scratch_operands = 0 : i64, tpu.core_type = #tpu.core_type<tc>, window_params = [{transform_indices = @transform_0, window_bounds = array<i64: 1, 8, 16>}, {pipeline_mode = #tpu.pipeline_mode<synchronous>, transform_indices = @transform_1, window_bounds = array<i64: 4, 8, 4>}, {pipeline_mode = #tpu.pipeline_mode<synchronous>, transform_indices = @transform_2, window_bounds = array<i64: 1, 4>}, {transform_indices = @transform_3, window_bounds = array<i64: 1, 16, 8>}]} {
    %c0 = arith.constant 0 : index
    %c0_0 = arith.constant 0 : index
    %c0_1 = arith.constant 0 : index
    %0 = vector.load %arg1[%c0, %c0_0, %c0_1] : memref<1x8x16xf32, #tpu.memory_space<vmem>>, vector<1x8x16xf32>
    %1 = vector.shape_cast %0 : vector<1x8x16xf32> to vector<8x16xf32>
    %2 = tpu.transpose %1, [1, 0] : vector<8x16xf32> -> vector<16x8xf32>
    %cst = arith.constant 0.000000e+00 : f32
    %3 = vector.broadcast %cst : f32 to vector<1x8xf32>
    %4 = vector.extract_strided_slice %2 {offsets = [0, 0], sizes = [15, 8], strides = [1, 1]} : vector<16x8xf32> to vector<15x8xf32>
    %5 = tpu.concatenate %3, %4 in 0 : vector<1x8xf32>, vector<15x8xf32> -> vector<16x8xf32>
    %6 = vector.extract_strided_slice %2 {offsets = [1, 0], sizes = [15, 8], strides = [1, 1]} : vector<16x8xf32> to vector<15x8xf32>
    %7 = tpu.concatenate %6, %3 in 0 : vector<15x8xf32>, vector<1x8xf32> -> vector<16x8xf32>
    %8 = arith.truncf %2 : vector<16x8xf32> to vector<16x8xbf16>
    %9 = arith.truncf %5 : vector<16x8xf32> to vector<16x8xbf16>
    %10 = arith.truncf %7 : vector<16x8xf32> to vector<16x8xbf16>
    %c0_2 = arith.constant 0 : index
    %c0_3 = arith.constant 0 : index
    %c0_4 = arith.constant 0 : index
    %11 = vector.load %arg2[%c0_2, %c0_3, %c0_4] : memref<4x8x4xbf16, #tpu.memory_space<vmem>>, vector<1x8x4xbf16>
    %12 = vector.shape_cast %11 : vector<1x8x4xbf16> to vector<8x4xbf16>
    %c1 = arith.constant 1 : index
    %c0_5 = arith.constant 0 : index
    %c0_6 = arith.constant 0 : index
    %13 = vector.load %arg2[%c1, %c0_5, %c0_6] : memref<4x8x4xbf16, #tpu.memory_space<vmem>>, vector<1x8x4xbf16>
    %14 = vector.shape_cast %13 : vector<1x8x4xbf16> to vector<8x4xbf16>
    %c2 = arith.constant 2 : index
    %c0_7 = arith.constant 0 : index
    %c0_8 = arith.constant 0 : index
    %15 = vector.load %arg2[%c2, %c0_7, %c0_8] : memref<4x8x4xbf16, #tpu.memory_space<vmem>>, vector<1x8x4xbf16>
    %16 = vector.shape_cast %15 : vector<1x8x4xbf16> to vector<8x4xbf16>
    %c3 = arith.constant 3 : index
    %c0_9 = arith.constant 0 : index
    %c0_10 = arith.constant 0 : index
    %17 = vector.load %arg2[%c3, %c0_9, %c0_10] : memref<4x8x4xbf16, #tpu.memory_space<vmem>>, vector<1x8x4xbf16>
    %18 = vector.shape_cast %17 : vector<1x8x4xbf16> to vector<8x4xbf16>
    %cst_11 = arith.constant dense<0.000000e+00> : vector<16x4xf32>
    %19 = tpu.matmul %8, %14, %cst_11 {dimension_numbers = #tpu.dot_dimension_numbers<[1], [0], [0], [1], [0, 0, 1, 1], [], []>} : vector<16x8xbf16>, vector<8x4xbf16>, vector<16x4xf32> -> vector<16x4xf32>
    %cst_12 = arith.constant dense<0.000000e+00> : vector<16x4xf32>
    %20 = tpu.matmul %9, %18, %cst_12 {dimension_numbers = #tpu.dot_dimension_numbers<[1], [0], [0], [1], [0, 0, 1, 1], [], []>} : vector<16x8xbf16>, vector<8x4xbf16>, vector<16x4xf32> -> vector<16x4xf32>
    %21 = arith.addf %19, %20 : vector<16x4xf32>
    %cst_13 = arith.constant dense<0.000000e+00> : vector<16x4xf32>
    %22 = tpu.matmul %8, %16, %cst_13 {dimension_numbers = #tpu.dot_dimension_numbers<[1], [0], [0], [1], [0, 0, 1, 1], [], []>} : vector<16x8xbf16>, vector<8x4xbf16>, vector<16x4xf32> -> vector<16x4xf32>
    %cst_14 = arith.constant dense<0.000000e+00> : vector<16x4xf32>
    %23 = tpu.matmul %10, %12, %cst_14 {dimension_numbers = #tpu.dot_dimension_numbers<[1], [0], [0], [1], [0, 0, 1, 1], [], []>} : vector<16x8xbf16>, vector<8x4xbf16>, vector<16x4xf32> -> vector<16x4xf32>
    %24 = arith.addf %22, %23 : vector<16x4xf32>
    %c0_15 = arith.constant 0 : index
    %c0_16 = arith.constant 0 : index
    %25 = vector.load %arg3[%c0_15, %c0_16] : memref<1x4xf32, #tpu.memory_space<vmem>>, vector<1x4xf32>
    %26 = vector.broadcast %25 : vector<1x4xf32> to vector<16x4xf32>
    %27 = arith.addf %21, %26 : vector<16x4xf32>
    %28 = vector.broadcast %25 : vector<1x4xf32> to vector<16x4xf32>
    %29 = arith.addf %24, %28 : vector<16x4xf32>
    %cst_17 = arith.constant 0.000000e+00 : f32
    %30 = vector.broadcast %cst_17 : f32 to vector<16x4xf32>
    %31 = arith.cmpf ogt, %27, %30 : vector<16x4xf32>
    %cst_18 = arith.constant 1.000000e-01 : f32
    %32 = vector.broadcast %cst_18 : f32 to vector<16x4xf32>
    %33 = arith.mulf %32, %27 : vector<16x4xf32>
    %34 = arith.select %31, %27, %33 : vector<16x4xi1>, vector<16x4xf32>
    %cst_19 = arith.constant 0.000000e+00 : f32
    %35 = vector.broadcast %cst_19 : f32 to vector<16x4xf32>
    %36 = arith.cmpf ogt, %29, %35 : vector<16x4xf32>
    %cst_20 = arith.constant 1.000000e-01 : f32
    %37 = vector.broadcast %cst_20 : f32 to vector<16x4xf32>
    %38 = arith.mulf %37, %29 : vector<16x4xf32>
    %39 = arith.select %36, %29, %38 : vector<16x4xi1>, vector<16x4xf32>
    %c0_21 = arith.constant 0 : index
    %c0_22 = arith.constant 0 : index
    %c0_23 = arith.constant 0 : index
    %40 = vector.load %arg4[%c0_21, %c0_22, %c0_23] : memref<1x16x8xf32, #tpu.memory_space<vmem>>, vector<1x16x4xf32>
    %41 = vector.shape_cast %40 : vector<1x16x4xf32> to vector<16x4xf32>
    %42 = vector.shape_cast %34 : vector<16x4xf32> to vector<1x16x4xf32>
    tpu.vector_store %arg4[%c0_21, %c0_22, %c0_23], %42 {strides = array<i32>} : memref<1x16x8xf32, #tpu.memory_space<vmem>>, vector<1x16x4xf32>,
    %c0_24 = arith.constant 0 : index
    %c0_25 = arith.constant 0 : index
    %c4 = arith.constant 4 : index
    %43 = vector.load %arg4[%c0_24, %c0_25, %c4] : memref<1x16x8xf32, #tpu.memory_space<vmem>>, vector<1x16x4xf32>
    %44 = vector.shape_cast %43 : vector<1x16x4xf32> to vector<16x4xf32>
    %45 = vector.shape_cast %39 : vector<16x4xf32> to vector<1x16x4xf32>
    tpu.vector_store %arg4[%c0_24, %c0_25, %c4], %45 {strides = array<i32>} : memref<1x16x8xf32, #tpu.memory_space<vmem>>, vector<1x16x4xf32>,
    return
  }
  func.func @transform_0(%arg0: i32) -> (i32, i32, i32) {
    %c0_i32 = arith.constant 0 : i32
    %c0_i32_0 = arith.constant 0 : i32
    %c0_i32_1 = arith.constant 0 : i32
    return %arg0, %c0_i32, %c0_i32_0 : i32, i32, i32
  }
  func.func @transform_1(%arg0: i32) -> (i32, i32, i32) {
    %c0_i32 = arith.constant 0 : i32
    %c0_i32_0 = arith.constant 0 : i32
    %c0_i32_1 = arith.constant 0 : i32
    %c0_i32_2 = arith.constant 0 : i32
    return %c0_i32, %c0_i32_0, %c0_i32_1 : i32, i32, i32
  }
  func.func @transform_2(%arg0: i32) -> (i32, i32) {
    %c0_i32 = arith.constant 0 : i32
    %c0_i32_0 = arith.constant 0 : i32
    %c0_i32_1 = arith.constant 0 : i32
    return %c0_i32, %c0_i32_0 : i32, i32
  }
  func.func @transform_3(%arg0: i32) -> (i32, i32, i32) {
    %c0_i32 = arith.constant 0 : i32
    %c0_i32_0 = arith.constant 0 : i32
    %c0_i32_1 = arith.constant 0 : i32
    return %arg0, %c0_i32, %c0_i32_0 : i32, i32, i32
  }
}

</mosaic_0001>

<llo_original>
// kernel: upsample.1
$region0: #{upsample.1}
  #allocation0 [shape = 'u32[]', space=smem, size = 0x4, offset = 0x4, fixed_abs, tag = 'smem constant byte address 0x4 - core index']
  #allocation1 [shape = 'u32[144,128]{1,0:T(1,128)}', space=vmem, size = 0x12000, scoped, tag = 'internal scratch']
  %s0 = inlined_call_operand.vmem [shape: f32[2,8,16], index: 0, kind: input, shape index: {}]
  %s1 = inlined_call_operand.vmem [shape: bf16[4,8,4], index: 1, kind: input, shape index: {}]
  %s2 = inlined_call_operand.vmem [shape: f32[1,4], index: 2, kind: input, shape index: {}]
  %s3 = inlined_call_operand.vmem [shape: f32[2,16,8], index: 3, kind: output, shape index: {}]
  %s4 = sld [smem:[#allocation0]]
  $region45: #{upsample.1} parent=0
    _
  %s6 = ssub.s32 1, %s4
  %s7 = scalar_select 0, %s6, %s4
  loop: start=0, step=1, limit=4
  $region2: #{upsample.1} parent=0 // loop_pre_header
    _
  $region3: #{upsample.1} parent=0 // loop_header
    %s9 = sphi 0, %s13
    %p10 = scmp.ge.s32.totalorder %s9, 4
    %s19 = sphi 0, %s21
    %s22 = sphi 0, %s19
    %s23 = sphi 0, %s22
    %s39 = sphi 0, %s23
    %s43 = sphi 0, %s43
    %s45 = sphi 0, %s43
    %s46 = sphi 0, %s45
    %s60 = sphi 0, %s46
    %s64 = sphi 0, %s64
    %s66 = sphi 0, %s64
    %s67 = sphi 0, %s66
    %s81 = sphi 0, %s67
    %s87 = sphi 0, %s89
    %s90 = sphi 0, %s87
    %s91 = sphi 0, %s90
    %s107 = sphi 0, %s91
  $region4: #{upsample.1} parent=0 // loop_header_branch
    %12 = sbr.rel (%p10) target = $region8
  $region5: #{upsample.1} parent=0 // loop_body
    %s14 = ssub.s32 %s9, 1
    %s15 = ssub.s32 %s9, 2
    %s16 = sadd.s32 %s9, 1
    %s17 = ssub.s32 %s9, %s16
    %p18 = scmp.eq.s32.totalorder %s17, 0
    %s20 = sadd.s32 %s19, 1
    %s21 = scalar_select %p18, %s19, %s20
    %p24 = pneg %p18
    %p25 = scmp.eq.s32.totalorder %s9, 1
    %p26 = por %p24, %p25
    %p27 = scmp.ne.s32.totalorder %s19, %s22
    %p28 = scmp.eq.s32.totalorder %s9, 0
    %p29 = por %p27, %p28
    %p30 = scmp.ne.s32.totalorder %s19, %s22
    %p31 = scmp.eq.s32.totalorder %s14, 1
    %p32 = por %p30, %p31
    %p33 = scmp.ne.s32.totalorder %s22, %s23
    %p34 = scmp.eq.s32.totalorder %s14, 0
    %p35 = por %p33, %p34
    %p36 = scmp.ne.s32.totalorder %s22, %s23
    %p37 = scmp.eq.s32.totalorder %s15, 1
    %p38 = por %p36, %p37
    %p40 = scmp.ne.s32.totalorder %s23, %s39
    %p41 = scmp.eq.s32.totalorder %s15, 0
    %p42 = por %p40, %p41
    %s44 = sadd.s32 %s43, 1
    %p47 = scmp.eq.s32.totalorder %s9, 1
    %p48 = scmp.ne.s32.totalorder %s43, %s45
    %p49 = scmp.eq.s32.totalorder %s9, 0
    %p50 = por %p48, %p49
    %p51 = scmp.ne.s32.totalorder %s43, %s45
    %p52 = scmp.eq.s32.totalorder %s14, 1
    %p53 = por %p51, %p52
    %p54 = scmp.ne.s32.totalorder %s45, %s46
    %p55 = scmp.eq.s32.totalorder %s14, 0
    %p56 = por %p54, %p55
    %p57 = scmp.ne.s32.totalorder %s45, %s46
    %p58 = scmp.eq.s32.totalorder %s15, 1
    %p59 = por %p57, %p58
    %p61 = scmp.ne.s32.totalorder %s46, %s60
    %p62 = scmp.eq.s32.totalorder %s15, 0
    %p63 = por %p61, %p62
    %s65 = sadd.s32 %s64, 1
    %p68 = scmp.eq.s32.totalorder %s9, 1
    %p69 = scmp.ne.s32.totalorder %s64, %s66
    %p70 = scmp.eq.s32.totalorder %s9, 0
    %p71 = por %p69, %p70
    %p72 = scmp.ne.s32.totalorder %s64, %s66
    %p73 = scmp.eq.s32.totalorder %s14, 1
    %p74 = por %p72, %p73
    %p75 = scmp.ne.s32.totalorder %s66, %s67
    %p76 = scmp.eq.s32.totalorder %s14, 0
    %p77 = por %p75, %p76
    %p78 = scmp.ne.s32.totalorder %s66, %s67
    %p79 = scmp.eq.s32.totalorder %s15, 1
    %p80 = por %p78, %p79
    %p82 = scmp.ne.s32.totalorder %s67, %s81
    %p83 = scmp.eq.s32.totalorder %s15, 0
    %p84 = por %p82, %p83
    %s85 = ssub.s32 %s9, %s16
    %p86 = scmp.eq.s32.totalorder %s85, 0
    %s88 = sadd.s32 %s87, 1
    %s89 = scalar_select %p86, %s87, %s88
    %p92 = pneg %p86
    %p93 = scmp.eq.s32.totalorder %s9, 1
    %p94 = por %p92, %p93
    %p95 = scmp.ne.s32.totalorder %s87, %s90
    %p96 = scmp.eq.s32.totalorder %s9, 0
    %p97 = por %p95, %p96
    %p98 = scmp.ne.s32.totalorder %s87, %s90
    %p99 = scmp.eq.s32.totalorder %s14, 1
    %p100 = por %p98, %p99
    %p101 = scmp.ne.s32.totalorder %s90, %s91
    %p102 = scmp.eq.s32.totalorder %s14, 0
    %p103 = por %p101, %p102
    %p104 = scmp.ne.s32.totalorder %s90, %s91
    %p105 = scmp.eq.s32.totalorder %s15, 1
    %p106 = por %p104, %p105
    %p108 = scmp.ne.s32.totalorder %s91, %s107
    %p109 = scmp.eq.s32.totalorder %s15, 0
    %p110 = por %p108, %p109
    %p111 = scmp.le.s32.totalorder 1, %s9
    %p112 = scmp.lt.s32.totalorder %s9, 3
    %p113 = pnand %p111, %p112
    %p114 = pneg %p113
    // Predicated region
    $region9: #{upsample.1} parent=5 // pred_check
      _
    $region10: #{upsample.1} parent=5 // pred_check_branch
      %116 = sbr.rel (%p113) target = $region12
    $region11: #{upsample.1} parent=5 // pred_region
      %s117 = ssub.s32 %s9, 1
      // Predicated region
      $region13: #{upsample.1} parent=11 // pred_check
        %p118 = pneg %p56
      $region14: #{upsample.1} parent=11 // pred_check_branch
        %120 = sbr.rel (%p118) target = $region16
      $region15: #{upsample.1} parent=11 // pred_region
        _
      $region16: #{upsample.1} parent=11 // pred_fallthru
        _
      // Predicated region
      $region17: #{upsample.1} parent=11 // pred_check
        %p121 = pneg %p77
      $region18: #{upsample.1} parent=11 // pred_check_branch
        %123 = sbr.rel (%p121) target = $region20
      $region19: #{upsample.1} parent=11 // pred_region
        _
      $region20: #{upsample.1} parent=11 // pred_fallthru
        _
    $region12: #{upsample.1} parent=5 // pred_fallthru
      _
    %p124 = scmp.lt.s32.totalorder %s9, 2
    // Predicated region
    $region21: #{upsample.1} parent=5 // pred_check
      %p125 = pneg %p124
    $region22: #{upsample.1} parent=5 // pred_check_branch
      %127 = sbr.rel (%p125) target = $region24
    $region23: #{upsample.1} parent=5 // pred_region
      // Predicated region
      $region25: #{upsample.1} parent=23 // pred_check
        %p128 = pneg %p29
      $region26: #{upsample.1} parent=23 // pred_check_branch
        %130 = sbr.rel (%p128) target = $region28
      $region27: #{upsample.1} parent=23 // pred_region
        %p131 = scmp.lt.s32.totalorder %s9, 1
        %s132 = scalar_select %p131, %s9, 1
        %s133 = smul.addr %s132, 8
        %s134 = scalar_lea.vmem %s0, %s133
      $region28: #{upsample.1} parent=23 // pred_fallthru
        _
    $region24: #{upsample.1} parent=5 // pred_fallthru
      _
    %p135 = scmp.le.s32.totalorder 1, %s9
    %p136 = scmp.lt.s32.totalorder %s9, 3
    %p137 = pnand %p135, %p136
    %p138 = pneg %p137
    // Predicated region
    $region29: #{upsample.1} parent=5 // pred_check
      _
    $region30: #{upsample.1} parent=5 // pred_check_branch
      %140 = sbr.rel (%p137) target = $region32
    $region31: #{upsample.1} parent=5 // pred_region
      %s141 = ssub.s32 %s9, 1
      %p142 = scmp.lt.s32.totalorder %s14, 1
      %s143 = scalar_select %p142, %s14, 1
      %s144 = smul.addr %s143, 8
      %s145 = scalar_lea.vmem %s0, %s144
      %p146 = pneg %p35
      %p147 = pneg %p32
      %p148 = pneg %p56
      %p149 = pneg %p53
      %p150 = pneg %p77
      %p151 = pneg %p74
      %p152 = pneg %p103
      %p153 = pneg %p100
      %p154 = scmp.lt.s32.totalorder %s14, 1
      %s155 = scalar_select %p154, %s14, 1
      %s156 = smul.addr %s155, 2
      %s157 = smul.addr %s156, 8
      %s158 = scalar_lea.vmem %s3, %s157
      %p159 = scmp.lt.s32.totalorder %s14, 1
      %s160 = scalar_select %p159, %s14, 1
      %s161 = smul.addr %s160, 8
      %s162 = scalar_lea.vmem %s0, %s161
      %p163 = scmp.lt.s32.totalorder %s14, 1
      %s164 = scalar_select %p163, %s14, 1
      %s165 = smul.addr %s164, 2
      %s166 = smul.addr %s165, 8
      %s167 = scalar_lea.vmem %s3, %s166
      %v169 = vld [vmem:[%s162] sm:$0xff]
      %170 = vxpose.xlu0.b32.start [1/16] %v169, 128
      %171 = vxpose.xlu0.b32.cont [2/16] 0.0, 128
      %172 = vxpose.xlu0.b32.cont [3/16] 0.0, 128
      %173 = vxpose.xlu0.b32.cont [4/16] 0.0, 128
      %174 = vxpose.xlu0.b32.cont [5/16] 0.0, 128
      %175 = vxpose.xlu0.b32.cont [6/16] 0.0, 128
      %176 = vxpose.xlu0.b32.cont [7/16] 0.0, 128
      %177 = vxpose.xlu0.b32.cont [8/16] 0.0, 128
      %178 = vxpose.xlu0.b32.cont [9/16] 0.0, 128
      %179 = vxpose.xlu0.b32.cont [10/16] 0.0, 128
      %180 = vxpose.xlu0.b32.cont [11/16] 0.0, 128
      %181 = vxpose.xlu0.b32.cont [12/16] 0.0, 128
      %182 = vxpose.xlu0.b32.cont [13/16] 0.0, 128
      %183 = vxpose.xlu0.b32.cont [14/16] 0.0, 128
      %184 = vxpose.xlu0.b32.cont [15/16] 0.0, 128
      %185 = vxpose.xlu0.b32.end [16/16] 0.0, 128
      %v186 = vpop.trf.xlu0
      %v187 = vpop.trf.xlu0
      %v188 = vpop.trf.xlu0
      %v189 = vpop.trf.xlu0
      %v190 = vpop.trf.xlu0
      %v191 = vpop.trf.xlu0
      %v192 = vpop.trf.xlu0
      %v193 = vpop.trf.xlu0
      %v194 = vpop.trf.xlu0
      %v195 = vpop.trf.xlu0
      %v196 = vpop.trf.xlu0
      %v197 = vpop.trf.xlu0
      %v198 = vpop.trf.xlu0
      %v199 = vpop.trf.xlu0
      %v200 = vpop.trf.xlu0
      %v201 = vpop.trf.xlu0
      %vm204 = vcmask 1040384
      %v205 = vrot.slane %v186, 7
      %v206 = vrot.slane %v187, 7
      %v207 = vsel %vm204, %v205, %v206
      %v210 = vsel %vm204, 0.0, %v205
      %vm211 = vcmask 1046528
      %v212 = vrot.slane %v186, 1
      %v213 = vrot.slane %v187, 1
      %v214 = vsel %vm211, %v212, %v213
      %v217 = vsel %vm211, %v213, 0.0
      %v218 = vpack.c.bf16 %v187, %v186
      %v219 = vpack.c.bf16 %v207, %v210
      %v220 = vpack.c.bf16 %v217, %v214
      %v221 = vld [vmem:[%s1] sm:$0xf]
      %s222 = scalar_lea.vmem %s1, 4
      %v223 = vld [vmem:[%s222] sm:$0xf]
      %s224 = scalar_lea.vmem %s1, 8
      %v225 = vld [vmem:[%s224] sm:$0xf]
      %s226 = scalar_lea.vmem %s1, 12
      %v227 = vld [vmem:[%s226] sm:$0xf]
      %vm228 = vcmask 64512
      %v230 = vsel %vm228, %v219, 0
      %vm232 = vcmask 1043456
      %v234 = vsel %vm232, %v227, 0
      %236 = vmatprep.subr.bf16.mxu0 0
      %237 = vmatpush1.bf16.msra.mxu0 %v234
      %238 = vmatprep.subr.bf16.mxu0 0
      %239 = vmatpush1.bf16.msra.mxu0 0
      %240 = vmatprep.subr.bf16.mxu0 0
      %241 = vmatpush1.bf16.msra.mxu0 0
      %242 = vmatprep.subr.bf16.mxu0 0
      %243 = vmatpush1.bf16.msra.mxu0 0
      %244 = vmatprep.subr.bf16.mxu0 0
      %245 = vmatpush1.bf16.msra.mxu0 0
      %246 = vmatprep.subr.bf16.mxu0 0
      %247 = vmatpush1.bf16.msra.mxu0 0
      %248 = vmatprep.subr.bf16.mxu0 0
      %249 = vmatpush1.bf16.msra.mxu0 0
      %250 = vmatprep.subr.bf16.mxu0 0
      %251 = vmatpush1.bf16.msra.mxu0 0
      %252 = vmatprep.subr.bf16.mxu0 0
      %253 = vmatpush1.bf16.msra.mxu0 0
      %254 = vmatprep.subr.bf16.mxu0 0
      %255 = vmatpush1.bf16.msra.mxu0 0
      %256 = vmatprep.subr.bf16.mxu0 0
      %257 = vmatpush1.bf16.msra.mxu0 0
      %258 = vmatprep.subr.bf16.mxu0 0
      %259 = vmatpush1.bf16.msra.mxu0 0
      %260 = vmatprep.subr.bf16.mxu0 0
      %261 = vmatpush1.bf16.msra.mxu0 0
      %262 = vmatprep.subr.bf16.mxu0 0
      %263 = vmatpush1.bf16.msra.mxu0 0
      %264 = vmatprep.subr.bf16.mxu0 0
      %265 = vmatpush1.bf16.msra.mxu0 0
      %266 = vmatprep.subr.bf16.mxu0 0
      %267 = vmatpush1.bf16.msra.mxu0 0
      %268 = vmatprep.mubr.bf16.mxu0 0
      %269 = vmatmul.mubr.bf16.gmra.mrb[0].mxu0 %v230
      %v270 = vpop.f32.mrb[0].mxu0
      %v271 = vadd.f32 0.0, %v270
      %v272 = vpop.f32.mrb[0].mxu0
      %v273 = vpop.f32.mrb[0].mxu0
      %v274 = vadd.f32 0.0, %v273
      %v275 = vpop.f32.mrb[0].mxu0
      %276 = vdwg.mxu0
      %v278 = vsel %vm228, %v218, 0
      %v281 = vsel %vm232, %v223, 0
      %283 = vmatprep.subr.bf16.mxu0 0
      %284 = vmatpush1.bf16.msra.mxu0 %v281
      %285 = vmatprep.subr.bf16.mxu0 0
      %286 = vmatpush1.bf16.msra.mxu0 0
      %287 = vmatprep.subr.bf16.mxu0 0
      %288 = vmatpush1.bf16.msra.mxu0 0
      %289 = vmatprep.subr.bf16.mxu0 0
      %290 = vmatpush1.bf16.msra.mxu0 0
      %291 = vmatprep.subr.bf16.mxu0 0
      %292 = vmatpush1.bf16.msra.mxu0 0
      %293 = vmatprep.subr.bf16.mxu0 0
      %294 = vmatpush1.bf16.msra.mxu0 0
      %295 = vmatprep.subr.bf16.mxu0 0
      %296 = vmatpush1.bf16.msra.mxu0 0
      %297 = vmatprep.subr.bf16.mxu0 0
      %298 = vmatpush1.bf16.msra.mxu0 0
      %299 = vmatprep.subr.bf16.mxu0 0
      %300 = vmatpush1.bf16.msra.mxu0 0
      %301 = vmatprep.subr.bf16.mxu0 0
      %302 = vmatpush1.bf16.msra.mxu0 0
      %303 = vmatprep.subr.bf16.mxu0 0
      %304 = vmatpush1.bf16.msra.mxu0 0
      %305 = vmatprep.subr.bf16.mxu0 0
      %306 = vmatpush1.bf16.msra.mxu0 0
      %307 = vmatprep.subr.bf16.mxu0 0
      %308 = vmatpush1.bf16.msra.mxu0 0
      %309 = vmatprep.subr.bf16.mxu0 0
      %310 = vmatpush1.bf16.msra.mxu0 0
      %311 = vmatprep.subr.bf16.mxu0 0
      %312 = vmatpush1.bf16.msra.mxu0 0
      %313 = vmatprep.subr.bf16.mxu0 0
      %314 = vmatpush1.bf16.msra.mxu0 0
      %315 = vmatprep.mubr.bf16.mxu0 0
      %316 = vmatmul.mubr.bf16.gmra.mrb[0].mxu0 %v278
      %v317 = vpop.f32.mrb[0].mxu0
      %v318 = vadd.f32 %v271, %v317
      %v319 = vpop.f32.mrb[0].mxu0
      %v320 = vpop.f32.mrb[0].mxu0
      %v321 = vadd.f32 %v274, %v320
      %v322 = vpop.f32.mrb[0].mxu0
      %323 = vdwg.mxu0
      %v325 = vsel %vm228, %v220, 0
      %v328 = vsel %vm232, %v221, 0
      %330 = vmatprep.subr.bf16.mxu0 0
      %331 = vmatpush1.bf16.msra.mxu0 %v328
      %332 = vmatprep.subr.bf16.mxu0 0
      %333 = vmatpush1.bf16.msra.mxu0 0
      %334 = vmatprep.subr.bf16.mxu0 0
      %335 = vmatpush1.bf16.msra.mxu0 0
      %336 = vmatprep.subr.bf16.mxu0 0
      %337 = vmatpush1.bf16.msra.mxu0 0
      %338 = vmatprep.subr.bf16.mxu0 0
      %339 = vmatpush1.bf16.msra.mxu0 0
      %340 = vmatprep.subr.bf16.mxu0 0
      %341 = vmatpush1.bf16.msra.mxu0 0
      %342 = vmatprep.subr.bf16.mxu0 0
      %343 = vmatpush1.bf16.msra.mxu0 0
      %344 = vmatprep.subr.bf16.mxu0 0
      %345 = vmatpush1.bf16.msra.mxu0 0
      %346 = vmatprep.subr.bf16.mxu0 0
      %347 = vmatpush1.bf16.msra.mxu0 0
      %348 = vmatprep.subr.bf16.mxu0 0
      %349 = vmatpush1.bf16.msra.mxu0 0
      %350 = vmatprep.subr.bf16.mxu0 0
      %351 = vmatpush1.bf16.msra.mxu0 0
      %352 = vmatprep.subr.bf16.mxu0 0
      %353 = vmatpush1.bf16.msra.mxu0 0
      %354 = vmatprep.subr.bf16.mxu0 0
      %355 = vmatpush1.bf16.msra.mxu0 0
      %356 = vmatprep.subr.bf16.mxu0 0
      %357 = vmatpush1.bf16.msra.mxu0 0
      %358 = vmatprep.subr.bf16.mxu0 0
      %359 = vmatpush1.bf16.msra.mxu0 0
      %360 = vmatprep.subr.bf16.mxu0 0
      %361 = vmatpush1.bf16.msra.mxu0 0
      %362 = vmatprep.mubr.bf16.mxu0 0
      %363 = vmatmul.mubr.bf16.gmra.mrb[0].mxu0 %v325
      %v364 = vpop.f32.mrb[0].mxu0
      %v365 = vadd.f32 0.0, %v364
      %v366 = vpop.f32.mrb[0].mxu0
      %v367 = vpop.f32.mrb[0].mxu0
      %v368 = vadd.f32 0.0, %v367
      %v369 = vpop.f32.mrb[0].mxu0
      %370 = vdwg.mxu0
      %v372 = vsel %vm232, %v225, 0
      %374 = vmatprep.subr.bf16.mxu0 0
      %375 = vmatpush1.bf16.msra.mxu0 %v372
      %376 = vmatprep.subr.bf16.mxu0 0
      %377 = vmatpush1.bf16.msra.mxu0 0
      %378 = vmatprep.subr.bf16.mxu0 0
      %379 = vmatpush1.bf16.msra.mxu0 0
      %380 = vmatprep.subr.bf16.mxu0 0
      %381 = vmatpush1.bf16.msra.mxu0 0
      %382 = vmatprep.subr.bf16.mxu0 0
      %383 = vmatpush1.bf16.msra.mxu0 0
      %384 = vmatprep.subr.bf16.mxu0 0
      %385 = vmatpush1.bf16.msra.mxu0 0
      %386 = vmatprep.subr.bf16.mxu0 0
      %387 = vmatpush1.bf16.msra.mxu0 0
      %388 = vmatprep.subr.bf16.mxu0 0
      %389 = vmatpush1.bf16.msra.mxu0 0
      %390 = vmatprep.subr.bf16.mxu0 0
      %391 = vmatpush1.bf16.msra.mxu0 0
      %392 = vmatprep.subr.bf16.mxu0 0
      %393 = vmatpush1.bf16.msra.mxu0 0
      %394 = vmatprep.subr.bf16.mxu0 0
      %395 = vmatpush1.bf16.msra.mxu0 0
      %396 = vmatprep.subr.bf16.mxu0 0
      %397 = vmatpush1.bf16.msra.mxu0 0
      %398 = vmatprep.subr.bf16.mxu0 0
      %399 = vmatpush1.bf16.msra.mxu0 0
      %400 = vmatprep.subr.bf16.mxu0 0
      %401 = vmatpush1.bf16.msra.mxu0 0
      %402 = vmatprep.subr.bf16.mxu0 0
      %403 = vmatpush1.bf16.msra.mxu0 0
      %404 = vmatprep.subr.bf16.mxu0 0
      %405 = vmatpush1.bf16.msra.mxu0 0
      %406 = vmatprep.mubr.bf16.mxu0 0
      %407 = vmatmul.mubr.bf16.gmra.mrb[0].mxu0 %v278
      %v408 = vpop.f32.mrb[0].mxu0
      %v409 = vadd.f32 %v365, %v408
      %v410 = vpop.f32.mrb[0].mxu0
      %v411 = vpop.f32.mrb[0].mxu0
      %v412 = vadd.f32 %v368, %v411
      %v413 = vpop.f32.mrb[0].mxu0
      %414 = vdwg.mxu0
      %v415 = vld [vmem:[%s2] sm:$0x1]
      %v417 = vlaneseq
      %v418 = vshrl.u32 %v417, 7
      %v419 = vsub.s32 0, %v418
      %v420 = vrot.slane %v415, %v419
      %v422 = vadd.f32 %v318, %v420
      %v423 = vadd.f32 %v321, %v420
      %v424 = vadd.f32 %v409, %v420
      %v425 = vadd.f32 %v412, %v420
      %vm426 = vcmp.gt.f32.partialorder %v422, 0.0
      %vm427 = vcmp.gt.f32.partialorder %v423, 0.0
      %v428 = vmul.f32 %v422, 0.1
      %v429 = vmul.f32 %v423, 0.1
      %v430 = vsel %vm426, %v422, %v428
      %v431 = vsel %vm427, %v423, %v429
      %vm432 = vcmp.gt.f32.partialorder %v424, 0.0
      %vm433 = vcmp.gt.f32.partialorder %v425, 0.0
      %v434 = vmul.f32 %v424, 0.1
      %v435 = vmul.f32 %v425, 0.1
      %v436 = vsel %vm432, %v424, %v434
      %v437 = vsel %vm433, %v425, %v435
      %vm438 = vcmask 31744
      %439 = vst.msk [vmem:[%s167] sm:$0xff] %vm438, %v430
      %440 = vst.msk [vmem:[%s167 + $0x8] sm:$0xff] %vm438, %v431
      %443 = vrot.lane.b32.xlu0 %v436, 4
      %v444 = vpop.permute.xlu0 %443
      %445 = vrot.lane.b32.xlu0 %v437, 4
      %v446 = vpop.permute.xlu0 %445
      %vm449 = vcmask 64544
      %450 = vst.msk [vmem:[%s167] sm:$0xff] %vm449, %v444
      %451 = vst.msk [vmem:[%s167 + $0x8] sm:$0xff] %vm449, %v446
      %p452 = scmp.lt.s32.totalorder %s14, 1
      %s453 = scalar_select %p452, %s14, 1
      %s454 = smul.addr %s453, 2
      %s455 = smul.addr %s454, 8
      %s456 = scalar_lea.vmem %s3, %s455
      // Predicated region
      $region33: #{upsample.1} parent=31 // pred_check
        %p457 = pneg %p100
      $region34: #{upsample.1} parent=31 // pred_check_branch
        %459 = sbr.rel (%p457) target = $region36
      $region35: #{upsample.1} parent=31 // pred_region
        _
      $region36: #{upsample.1} parent=31 // pred_fallthru
        _
    $region32: #{upsample.1} parent=5 // pred_fallthru
      _
    %p460 = scmp.le.s32.totalorder 2, %s9
    // Predicated region
    $region37: #{upsample.1} parent=5 // pred_check
      %p461 = pneg %p460
    $region38: #{upsample.1} parent=5 // pred_check_branch
      %463 = sbr.rel (%p461) target = $region40
    $region39: #{upsample.1} parent=5 // pred_region
      %s464 = ssub.s32 %s9, 2
      // Predicated region
      $region41: #{upsample.1} parent=39 // pred_check
        %p465 = pneg %p106
      $region42: #{upsample.1} parent=39 // pred_check_branch
        %467 = sbr.rel (%p465) target = $region44
      $region43: #{upsample.1} parent=39 // pred_region
        %p468 = scmp.lt.s32.totalorder %s15, 1
        %s469 = scalar_select %p468, %s15, 1
        %s470 = smul.addr %s469, 2
        %s471 = smul.addr %s470, 8
        %s472 = scalar_lea.vmem %s3, %s471
      $region44: #{upsample.1} parent=39 // pred_fallthru
        _
    $region40: #{upsample.1} parent=5 // pred_fallthru
      _
  $region6: #{upsample.1} parent=0 // loop_footer
    %s13 = sadd.s32 1, %s9
  $region7: #{upsample.1} parent=0 // loop_footer_branch
    %8 = sbr.rel target = $region3
  $region8: #{upsample.1} parent=0 // loop_exit
    _

</llo_original>
